<compile_context>
chip_gen: v5e
topology: v5e:2x2
jax: 0.10.0
libtpu: 0.0.40
codegen_flags: <defaults>
</compile_context>

<pallas_src>
import jax
import jax.numpy as jnp
from jax.experimental import pallas as pl
from jax.experimental.pallas import tpu as pltpu

_LANES = 128     # vreg lane width
_SUBLANES = 8    # vreg sublane count (f32)


def _fma_sigmoid_kernel(wb_ref, x1_ref, x2_ref, o_ref):
    # wb_ref : SMEM f32[3] = [w0, w1, bias]  (scalar reads, no VMEM vreg burn)
    # x1_ref, x2_ref, o_ref : VMEM f32[tr, 128] lane-dense tiles
    w0 = wb_ref[0]
    w1 = wb_ref[1]
    b = wb_ref[2]
    # VPU fused multiply-add — no MXU for a degenerate K=2, N_out=1 matmul.
    z = x1_ref[...] * w0 + x2_ref[...] * w1 + b
    # Exact sigmoid: exp on the EUP, division hidden under the DMA stream.
    # 1 / (1 + inf) == 0 exactly, so extreme negative z stays finite.
    o_ref[...] = 1.0 / (1.0 + jnp.exp(-z))


def single_list_input_model(input_list, weight, bias, *, row_tile=2048):
    """Forward pass of SingleListInputModel.

    input_list: list of [N, f_i] float arrays whose feature dims sum to 2.
    weight:     [1, 2]  (PyTorch nn.Linear layout)
    bias:       [1]
    returns:    [N, 1] float32
    """
    # Per-column 1-D views WITHOUT torch.cat-style concatenation or strided
    # column slicing (the common case is two contiguous [N, 1] arrays).
    cols = []
    for a in input_list:
        a = jnp.asarray(a, dtype=jnp.float32)
        if a.ndim == 1:
            a = a[:, None]
        if a.shape[1] == 1:
            cols.append(a.reshape(-1))          # contiguous — free reshape
        else:
            for j in range(a.shape[1]):         # rare path (single [N,2] input)
                cols.append(a[:, j])
    assert len(cols) == 2, "SingleListInputModel.fc is nn.Linear(2, 1)"
    n = cols[0].shape[0]

    # Lane-dense layout: stream each input column as a [rows, 128] slab.
    # Round the row count up to a multiple of the row tile so every grid step
    # sees a full-size tile (no tiny-tile fallback, no partial lane stores).
    rows_needed = pl.cdiv(n, _LANES)
    tr = min(row_tile, pl.cdiv(rows_needed, _SUBLANES) * _SUBLANES)
    tr = max(tr, _SUBLANES)
    rows = pl.cdiv(rows_needed, tr) * tr
    padded = rows * _LANES

    slabs = [jnp.pad(c, (0, padded - n)).reshape(rows, _LANES) for c in cols]

    # Weights + bias as three SMEM scalars.
    wb = jnp.concatenate(
        [weight.reshape(-1), bias.reshape(-1)]).astype(jnp.float32)   # (3,)

    out2d = pl.pallas_call(
        _fma_sigmoid_kernel,
        out_shape=jax.ShapeDtypeStruct((rows, _LANES), jnp.float32),
        grid=(rows // tr,),
        in_specs=[
            pl.BlockSpec(memory_space=pltpu.MemorySpace.SMEM),  # [w0, w1, b]
            pl.BlockSpec((tr, _LANES), lambda i: (i, 0)),
            pl.BlockSpec((tr, _LANES), lambda i: (i, 0)),
        ],
        out_specs=pl.BlockSpec((tr, _LANES), lambda i: (i, 0)),
        compiler_params=pltpu.CompilerParams(
            dimension_semantics=("parallel",),
            vmem_limit_bytes=32 * 1024 * 1024),
    )(wb, *slabs)

    # Undo the lane-dense padding/reshape (padded lanes hold sigmoid(b) and
    # are sliced off here).
    return out2d.reshape(-1)[:n].reshape(n, 1)


if __name__ == "__main__":
    key = jax.random.PRNGKey(0)
    k_a, k_b, k_w, k_bias = jax.random.split(key, 4)

    N = 8
    # Two inputs in the list, each [N, 1], concatenated -> [N, 2]
    x1 = jax.random.normal(k_a, (N, 1), dtype=jnp.float32)
    x2 = jax.random.normal(k_b, (N, 1), dtype=jnp.float32)

    # Deterministic Linear(2, 1) parameters (PyTorch layout: weight [1,2], bias [1])
    weight = jax.random.normal(k_w, (1, 2), dtype=jnp.float32) * 0.5
    bias = jax.random.normal(k_bias, (1,), dtype=jnp.float32) * 0.1

    out = single_list_input_model([x1, x2], weight, bias)
    out = jax.block_until_ready(out)

    # Reference check in plain JAX (exact sigmoid in the kernel -> tight tol).
    ref = jax.nn.sigmoid(jnp.concatenate([x1, x2], axis=1) @ weight.T + bias)
    assert out.shape == (N, 1)
    assert jnp.allclose(out, ref, atol=1e-5, rtol=1e-5), "mismatch vs reference"

    # Extreme-magnitude inputs: exp overflow must map to 0/1, never NaN.
    xe = jnp.array([[1000.0], [-1000.0]], dtype=jnp.float32)
    out_e = jax.block_until_ready(single_list_input_model([xe, xe], weight, bias))
    assert bool(jnp.all(jnp.isfinite(out_e)))

    print("KERNEL_OK")
</pallas_src>

<mosaic_0001>
module attributes {stable_mosaic.version = 11 : i64} {
  func.func @_fma_sigmoid_kernel(%arg0: i32, %arg1: memref<3xf32, #tpu.memory_space<smem>>, %arg2: memref<8x128xf32, #tpu.memory_space<vmem>>, %arg3: memref<8x128xf32, #tpu.memory_space<vmem>>, %arg4: memref<8x128xf32, #tpu.memory_space<vmem>>) attributes {dimension_semantics = [#tpu.dimension_semantics<parallel>], iteration_bounds = array<i64: 1>, scalar_prefetch = 0 : i64, scratch_operands = 0 : i64, tpu.core_type = #tpu.core_type<tc>, window_params = [{transform_indices = @transform_0, window_bounds = array<i64: 3>}, {transform_indices = @transform_1, window_bounds = array<i64: 8, 128>}, {transform_indices = @transform_2, window_bounds = array<i64: 8, 128>}, {transform_indices = @transform_3, window_bounds = array<i64: 8, 128>}]} {
    %c0 = arith.constant 0 : index
    %0 = memref.load %arg1[%c0] : memref<3xf32, #tpu.memory_space<smem>>
    %c1 = arith.constant 1 : index
    %1 = memref.load %arg1[%c1] : memref<3xf32, #tpu.memory_space<smem>>
    %c2 = arith.constant 2 : index
    %2 = memref.load %arg1[%c2] : memref<3xf32, #tpu.memory_space<smem>>
    %c0_0 = arith.constant 0 : index
    %c0_1 = arith.constant 0 : index
    %3 = vector.load %arg2[%c0_0, %c0_1] : memref<8x128xf32, #tpu.memory_space<vmem>>, vector<8x128xf32>
    %4 = vector.broadcast %0 : f32 to vector<8x128xf32>
    %5 = arith.mulf %3, %4 : vector<8x128xf32>
    %c0_2 = arith.constant 0 : index
    %c0_3 = arith.constant 0 : index
    %6 = vector.load %arg3[%c0_2, %c0_3] : memref<8x128xf32, #tpu.memory_space<vmem>>, vector<8x128xf32>
    %7 = vector.broadcast %1 : f32 to vector<8x128xf32>
    %8 = arith.mulf %6, %7 : vector<8x128xf32>
    %9 = arith.addf %5, %8 : vector<8x128xf32>
    %10 = vector.broadcast %2 : f32 to vector<8x128xf32>
    %11 = arith.addf %9, %10 : vector<8x128xf32>
    %cst = arith.constant 0.000000e+00 : f32
    %12 = vector.broadcast %cst : f32 to vector<8x128xf32>
    %13 = arith.subf %12, %11 : vector<8x128xf32>
    %14 = math.exp %13 : vector<8x128xf32>
    %cst_4 = arith.constant 1.000000e+00 : f32
    %15 = vector.broadcast %cst_4 : f32 to vector<8x128xf32>
    %16 = arith.addf %15, %14 : vector<8x128xf32>
    %cst_5 = arith.constant 1.000000e+00 : f32
    %17 = vector.broadcast %cst_5 : f32 to vector<8x128xf32>
    %18 = arith.divf %17, %16 : vector<8x128xf32>
    %c0_6 = arith.constant 0 : index
    %c0_7 = arith.constant 0 : index
    %19 = vector.load %arg4[%c0_6, %c0_7] : memref<8x128xf32, #tpu.memory_space<vmem>>, vector<8x128xf32>
    tpu.vector_store %arg4[%c0_6, %c0_7], %18 {strides = array<i32>} : memref<8x128xf32, #tpu.memory_space<vmem>>, vector<8x128xf32>,
    return
  }
  func.func @transform_0(%arg0: i32) -> i32 {
    %c0_i32 = arith.constant 0 : i32
    %c0_i32_0 = arith.constant 0 : i32
    return %c0_i32 : i32
  }
  func.func @transform_1(%arg0: i32) -> (i32, i32) {
    %c0_i32 = arith.constant 0 : i32
    %c0_i32_0 = arith.constant 0 : i32
    return %arg0, %c0_i32 : i32, i32
  }
  func.func @transform_2(%arg0: i32) -> (i32, i32) {
    %c0_i32 = arith.constant 0 : i32
    %c0_i32_0 = arith.constant 0 : i32
    return %arg0, %c0_i32 : i32, i32
  }
  func.func @transform_3(%arg0: i32) -> (i32, i32) {
    %c0_i32 = arith.constant 0 : i32
    %c0_i32_0 = arith.constant 0 : i32
    return %arg0, %c0_i32 : i32, i32
  }
}

</mosaic_0001>

<llo_original>
// kernel: tpu_custom_call.1
$region0: #{tpu_custom_call.1}
  #allocation0 [shape = 'u32[]', space=smem, size = 0x4, offset = 0x4, fixed_abs, tag = 'smem constant byte address 0x4 - core index']
  #allocation1 [shape = 'u32[72,128]{1,0:T(1,128)}', space=vmem, size = 0x9000, scoped, tag = 'internal scratch']
  %s0 = inlined_call_operand.hbm [shape: f32[3], index: 0, kind: input, shape index: {}]
  %s1 = inlined_call_operand.hbm [shape: f32[8,128], index: 1, kind: input, shape index: {}]
  %s2 = inlined_call_operand.hbm [shape: f32[8,128], index: 2, kind: input, shape index: {}]
  %s3 = inlined_call_operand.hbm [shape: f32[8,128], index: 3, kind: output, shape index: {}]
  %s4 = sld [smem:[#allocation0]]
  $region34: #{tpu_custom_call.1} parent=0
    _
  %s6 = ssub.s32 1, %s4
  %s7 = scalar_select 0, %s6, %s4
  $region1: #{tpu_custom_call.1} parent=0
    #allocation2 [shape = 'u8[512]{0}', space=smem, size = 0x200, scoped, tag = 'input window, operand 0, single buffered']
    #allocation3 [shape = 's32[1]{0}', space=sflag, size = 0x4, scoped, tag = 'scoped memory for tpu_custom_call.1']
    #allocation4 [shape = 's32[1]{0}', space=sflag, size = 0x4, scoped, tag = 'scoped memory for tpu_custom_call.1']
    #allocation5 [shape = 's32[1]{0}', space=sflag, size = 0x4, scoped, tag = 'scoped memory for tpu_custom_call.1']
    #allocation6 [shape = 'u8[4096]{0}', space=vmem, size = 0x1000, scoped, tag = 'input window, operand 1, single buffered']
    #allocation7 [shape = 'u8[4096]{0}', space=vmem, size = 0x1000, scoped, tag = 'input window, operand 2, single buffered']
    #allocation8 [shape = 's32[1]{0}', space=sflag, size = 0x4, scoped, tag = 'scoped memory for tpu_custom_call.1']
    #allocation9 [shape = 'u8[4096]{0}', space=vmem, size = 0x1000, scoped, tag = 'output window, operand 0, single buffered']
    %8 = vsyncpa [#allocation5], 0
    %9 = vsyncpa [#allocation3], 0
    %10 = vsyncpa [#allocation8], 0
    %11 = vsyncpa [#allocation4], 0
    // Predicated region
    $region2: #{tpu_custom_call.1} parent=1 // pred_check
      _
    $region3: #{tpu_custom_call.1} parent=1 // pred_check_branch
      %13 = sbr.rel (0) target = $region5
    $region4: #{tpu_custom_call.1} parent=1 // pred_region
      %15 = vsyncadd [#allocation5], 0
      %s17 = sshll.u32 %s0, 4
      %s18 = int_to_ptr.hbm [resolvable:$true] %s17
      %20 = dma.hbm_to_smem %s18, 16, [#allocation2], [#allocation5]
    $region5: #{tpu_custom_call.1} parent=1 // pred_fallthru
      _
    // Predicated region
    $region6: #{tpu_custom_call.1} parent=1 // pred_check
      _
    $region7: #{tpu_custom_call.1} parent=1 // pred_check_branch
      %22 = sbr.rel (0) target = $region9
    $region8: #{tpu_custom_call.1} parent=1 // pred_region
      %24 = vsyncadd [#allocation3], 0
      %s26 = sshll.u32 %s1, 4
      %s27 = int_to_ptr.hbm [resolvable:$true] %s26
      %s28 = sshll.u32 [#allocation6], 4
      %s29 = int_to_ptr.vmem [resolvable:$true] %s28
      %31 = dma.hbm_to_vmem [thread:$0]  %s27, 128, %s29, [#allocation3]
    $region9: #{tpu_custom_call.1} parent=1 // pred_fallthru
      _
    // Predicated region
    $region10: #{tpu_custom_call.1} parent=1 // pred_check
      _
    $region11: #{tpu_custom_call.1} parent=1 // pred_check_branch
      %33 = sbr.rel (0) target = $region13
    $region12: #{tpu_custom_call.1} parent=1 // pred_region
      %35 = vsyncadd [#allocation8], 0
      %s37 = sshll.u32 %s2, 4
      %s38 = int_to_ptr.hbm [resolvable:$true] %s37
      %s39 = sshll.u32 [#allocation7], 4
      %s40 = int_to_ptr.vmem [resolvable:$true] %s39
      %42 = dma.hbm_to_vmem [thread:$0]  %s38, 128, %s40, [#allocation8]
    $region13: #{tpu_custom_call.1} parent=1 // pred_fallthru
      _
    // Predicated region
    $region14: #{tpu_custom_call.1} parent=1 // pred_check
      _
    $region15: #{tpu_custom_call.1} parent=1 // pred_check_branch
      %44 = sbr.rel (0) target = $region17
    $region16: #{tpu_custom_call.1} parent=1 // pred_region
      %46 = dma.done [#allocation5], 16
    $region17: #{tpu_custom_call.1} parent=1 // pred_fallthru
      _
    // Predicated region
    $region18: #{tpu_custom_call.1} parent=1 // pred_check
      _
    $region19: #{tpu_custom_call.1} parent=1 // pred_check_branch
      %48 = sbr.rel (0) target = $region21
    $region20: #{tpu_custom_call.1} parent=1 // pred_region
      %50 = dma.done [#allocation3], 128
    $region21: #{tpu_custom_call.1} parent=1 // pred_fallthru
      _
    // Predicated region
    $region22: #{tpu_custom_call.1} parent=1 // pred_check
      _
    $region23: #{tpu_custom_call.1} parent=1 // pred_check_branch
      %52 = sbr.rel (0) target = $region25
    $region24: #{tpu_custom_call.1} parent=1 // pred_region
      %54 = dma.done [#allocation8], 128
    $region25: #{tpu_custom_call.1} parent=1 // pred_fallthru
      _
    %55 = sfence
    %s56 = sld [smem:[#allocation2]]
    %s57 = sld [smem:[#allocation2 + $0x1]]
    %s58 = sld [smem:[#allocation2 + $0x2]]
    %v59 = vld [vmem:[#allocation6] sm:$0xff]
    %v60 = vstv %s56
    %v61 = vmul.f32 %v59, %v60
    %v62 = vld [vmem:[#allocation7] sm:$0xff]
    %v63 = vstv %s57
    %v64 = vmul.f32 %v62, %v63
    %v65 = vadd.f32 %v61, %v64
    %v66 = vstv %s58
    %v67 = vadd.f32 %v65, %v66
    %v68 = vsub.f32 0.0, %v67
    %v69 = vmul.f32 %v68, 1.442695
    %v70 = vpow.pop %v69
    %v71 = vadd.f32 %v70, 1.0
    %v72 = vrcp.pop %v71
    %v73 = vmul.f32 %v71, %v72
    %v74 = vsub.f32 1.0, %v73
    %v75 = vmul.f32 %v72, %v74
    %v76 = vadd.f32 %v72, %v75
    %vm77 = vweird.f32 %v71
    %vm78 = vweird.f32 %v72
    %vm79 = vmor %vm77, %vm78
    %v80 = vsel %vm79, %v72, %v76
    %v81 = vand.u32 2147483647, %v71
    %vm82 = vcmp.eq.f32.partialorder %v81, 8.507059e+37
    %v83 = vand.u32 %v71, 2147483648
    %v84 = vor.u32 1.1754944e-38, %v83
    %v85 = vsel %vm82, %v84, %v80
    %v86 = vmul.f32 1.0, %v85
    %87 = vst [vmem:[#allocation9] sm:$0xff] %v86
    // Predicated region
    $region26: #{tpu_custom_call.1} parent=1 // pred_check
      _
    $region27: #{tpu_custom_call.1} parent=1 // pred_check_branch
      %89 = sbr.rel (0) target = $region29
    $region28: #{tpu_custom_call.1} parent=1 // pred_region
      %91 = vsyncadd [#allocation4], 0
      %s93 = sshll.u32 [#allocation9], 4
      %s94 = int_to_ptr.vmem [resolvable:$true] %s93
      %s95 = sshll.u32 %s3, 4
      %s96 = int_to_ptr.hbm [resolvable:$true] %s95
      %98 = dma.vmem_to_hbm [thread:$0]  %s94, 128, %s96, [#allocation4]
    $region29: #{tpu_custom_call.1} parent=1 // pred_fallthru
      _
    // Predicated region
    $region30: #{tpu_custom_call.1} parent=1 // pred_check
      _
    $region31: #{tpu_custom_call.1} parent=1 // pred_check_branch
      %100 = sbr.rel (0) target = $region33
    $region32: #{tpu_custom_call.1} parent=1 // pred_region
      %102 = dma.done [#allocation4], 128
    $region33: #{tpu_custom_call.1} parent=1 // pred_fallthru
      _
    %103 = vsyncpa [#allocation3], 1
    %104 = vsyncpa [#allocation8], 1
    %105 = vsyncpa [#allocation4], 1
    %106 = vsyncpa [#allocation5], 1

</llo_original>
